<compile_context>
chip_gen: v7x
topology: tpu7x:2x2x1
jax: 0.10.0
libtpu: 0.0.40
codegen_flags: <defaults>
</compile_context>

<pallas_src>
import functools

import jax
import jax.numpy as jnp
from jax.experimental import pallas as pl
from jax.experimental.pallas import tpu as pltpu

_LANES = 128
_SUBLANES = 8
_MIB = 1024 * 1024


def _round_up(a: int, b: int) -> int:
    return ((a + b - 1) // b) * b


def _tpu_generation() -> int:
    """Best-effort TPU generation (5, 6, 7, ...); 0 if unknown (conservative)."""
    try:
        kind = jax.devices()[0].device_kind.lower()
    except Exception:
        return 0
    for gen in (7, 6, 5, 4):
        if f"v{gen}" in kind or f"tpu{gen}" in kind:
            return gen
    return 0


def _block_config(itemsize: int, gen: int):
    """(target_rows, vmem_limit_bytes) per TPU generation."""
    if gen >= 7:
        # ~3.2 TB/s HBM: 8 MiB blocks keep the ~0.35us/step overhead <10%.
        # in+out double-buffered = 32 MiB > 32 MiB scoped default -> raise it.
        target_bytes = 8 * _MIB
        vmem_limit = 48 * _MIB
    elif gen == 6:
        # 4 buffers x 4 MiB = 16 MiB, well inside v6e's 32 MiB scoped default.
        target_bytes = 4 * _MIB
        vmem_limit = None
    else:
        # v5e (16 MiB scoped default) / unknown: 2 MiB already amortizes the
        # per-step cost to ~7%; bigger tiles only risk VMEM OOM.
        target_bytes = 2 * _MIB
        vmem_limit = None
    rows = max(_SUBLANES, target_bytes // (_LANES * itemsize))
    return _round_up(rows, _SUBLANES), vmem_limit


def _scaler_kernel(scale_ref, x_ref, o_ref):
    # scale_ref: SMEM f32 scalar (shape (1,)); x_ref/o_ref: VMEM tiles.
    # Multiply in f32 and cast back (matches torch "bf16 tensor * f32 param"
    # single-rounding semantics); the upcast is free — kernel is HBM-bound.
    o_ref[...] = (x_ref[...].astype(jnp.float32) * scale_ref[0]).astype(o_ref.dtype)


def _pallas_scale_2d(x2d: jax.Array, scale_arr: jax.Array, *, donate_input: bool = False):
    """Scale a lane-dense (rows, 128) slab with one pallas_call."""
    rows, lanes = x2d.shape
    assert lanes == _LANES
    itemsize = jnp.dtype(x2d.dtype).itemsize
    gen = _tpu_generation()
    target_rows, vmem_limit = _block_config(itemsize, gen)

    if rows <= target_rows:
        if gen >= 7 and rows > _SUBLANES:
            # Give each of v7x's two TensorCores at least one block.
            tr = max(_SUBLANES, _round_up(pl.cdiv(rows, 2), _SUBLANES))
        else:
            tr = rows  # full-extent block: always a legal block shape
    else:
        tr = target_rows  # multiple of 8; ragged last block is masked by Pallas
    grid = (pl.cdiv(rows, tr),)

    n_total = rows * _LANES
    cost = pl.CostEstimate(
        flops=n_total,
        transcendentals=0,
        bytes_accessed=2 * n_total * itemsize,
    )
    compiler_params = pltpu.CompilerParams(
        dimension_semantics=("parallel",),
        vmem_limit_bytes=vmem_limit,
    )

    kwargs = {}
    if donate_input:
        # Alias the tensor input (input index 1; index 0 is the SMEM scalar)
        # onto the output to drop the extra full-size output allocation.
        kwargs["input_output_aliases"] = {1: 0}

    return pl.pallas_call(
        _scaler_kernel,
        out_shape=jax.ShapeDtypeStruct((rows, _LANES), x2d.dtype),
        grid=grid,
        in_specs=[
            pl.BlockSpec(memory_space=pltpu.MemorySpace.SMEM),  # scale scalar
            pl.BlockSpec((tr, _LANES), lambda i: (i, 0)),
        ],
        out_specs=pl.BlockSpec((tr, _LANES), lambda i: (i, 0)),
        compiler_params=compiler_params,
        cost_estimate=cost,
        **kwargs,
    )(scale_arr, x2d)


# ---- differentiable core (learnable-scale training path) --------------------
@jax.custom_vjp
def _scale_core(x2d, scale_arr):
    return _pallas_scale_2d(x2d, scale_arr)


def _scale_core_fwd(x2d, scale_arr):
    return _pallas_scale_2d(x2d, scale_arr), (x2d, scale_arr)


def _scale_core_bwd(res, g):
    x2d, scale_arr = res
    gf = g.astype(jnp.float32)
    dx = (gf * scale_arr[0]).astype(x2d.dtype)
    dscale = jnp.sum(gf * x2d.astype(jnp.float32)).reshape(scale_arr.shape).astype(scale_arr.dtype)
    return dx, dscale


_scale_core.defvjp(_scale_core_fwd, _scale_core_bwd)


# ---- public entry point ------------------------------------------------------
def scaler(x: jax.Array, scale, *, donate_input: bool = False) -> jax.Array:
    """Elementwise multiply `x` by scalar `scale` (python float or jnp scalar)."""
    orig_shape = x.shape
    dtype = x.dtype
    n = x.size
    if n == 0:
        return x
    if not jnp.issubdtype(dtype, jnp.floating):
        # TODO(synk): PyTorch promotes int * float-param to float; defer to jnp
        # promotion rules here instead of a dedicated Pallas integer kernel.
        return x * scale

    # One kernel for every scale value: python floats are routed through the
    # same SMEM scalar path (no per-constant recompiles).
    scale_arr = jnp.asarray(scale, dtype=jnp.float32).reshape((1,))

    x_flat = x.reshape(-1)
    r = n % _LANES
    n_main = n - r

    if r == 0:
        x2d = x_flat.reshape(n // _LANES, _LANES)
        if donate_input:
            y2d = _pallas_scale_2d(x2d, scale_arr, donate_input=True)
        else:
            y2d = _scale_core(x2d, scale_arr)
        return y2d.reshape(orig_shape)

    # Ragged size: kernel on the lane-aligned prefix, plain jnp on the
    # <128-element tail (avoids the pad+slice-back path's ~3x HBM traffic).
    pieces = []
    if n_main > 0:
        x2d = x_flat[:n_main].reshape(n_main // _LANES, _LANES)
        pieces.append(_scale_core(x2d, scale_arr).reshape(-1))
    tail = x_flat[n_main:]
    pieces.append((tail.astype(jnp.float32) * scale_arr[0]).astype(dtype))
    return jnp.concatenate(pieces).reshape(orig_shape)


class ScalerJax:
    """Mirror of the PyTorch Scaler module.

    scale=None -> learnable f32 scalar initialized to 1.0 (trainable via the
    custom VJP); otherwise the given python float is fed through the same
    SMEM-scalar kernel (no constant-baked recompiles).
    """

    def __init__(self, scale=None):
        if scale is None:
            self.scale = jnp.array(1.0, dtype=jnp.float32)  # nn.Parameter(torch.tensor(1.0))
            self.learnable = True
        else:
            self.scale = float(scale)
            self.learnable = False

    def __call__(self, x):
        return scaler(x, self.scale)

    def extra_repr(self):
        sval = float(self.scale) if not self.learnable else float(self.scale)
        return f"scale={sval:.4f}, learnable={self.learnable}"


if __name__ == "__main__":
    key = jax.random.PRNGKey(0)
    x = jax.random.normal(key, (2, 4, 16, 16), dtype=jnp.float32)  # NCHW

    # Case 1: learnable scale (init 1.0) -> SMEM scalar path
    m1 = ScalerJax(scale=None)
    y1 = jax.block_until_ready(m1(x))
    assert y1.shape == x.shape and y1.dtype == x.dtype
    assert jnp.allclose(y1, x * 1.0, atol=1e-6)

    # Case 2: fixed python-float scale -> same SMEM kernel (no recompiles)
    m2 = ScalerJax(scale=0.5)
    y2 = jax.block_until_ready(m2(x))
    assert jnp.allclose(y2, x * 0.5, atol=1e-6)

    # Case 3: size not divisible by 128 -> lane-aligned prefix + tiny jnp tail
    x3 = jax.random.normal(jax.random.PRNGKey(1), (3, 5, 7, 11), dtype=jnp.float32)
    y3 = jax.block_until_ready(m2(x3))
    assert y3.shape == x3.shape
    assert jnp.allclose(y3, x3 * 0.5, atol=1e-6)

    # Case 4: bf16 input, learnable f32 scale -> dtype preserved
    x4 = jax.random.normal(jax.random.PRNGKey(2), (2, 4, 16, 16), dtype=jnp.bfloat16)
    y4 = jax.block_until_ready(m1(x4))
    assert y4.dtype == jnp.bfloat16
    assert jnp.allclose(y4.astype(jnp.float32), x4.astype(jnp.float32), atol=1e-2)

    # Case 5: gradients flow through the kernel (learnable-scale training path)
    def loss(s, xin):
        return jnp.sum(scaler(xin, s) ** 2)

    g = jax.block_until_ready(jax.grad(loss)(jnp.array(0.5, dtype=jnp.float32), x))
    g_ref = jnp.sum(2.0 * 0.5 * x * x)
    assert jnp.allclose(g, g_ref, rtol=1e-4)

    print("KERNEL_OK")
</pallas_src>

<mosaic_0001>
module attributes {stable_mosaic.version = 11 : i64} {
  func.func @_scaler_kernel(%arg0: i32, %arg1: memref<1xf32, #tpu.memory_space<smem>>, %arg2: memref<16x128xf32, #tpu.memory_space<vmem>>, %arg3: memref<16x128xf32, #tpu.memory_space<vmem>>) attributes {dimension_semantics = [#tpu.dimension_semantics<parallel>], iteration_bounds = array<i64: 1>, scalar_prefetch = 0 : i64, scratch_operands = 0 : i64, tpu.core_type = #tpu.core_type<tc>, window_params = [{transform_indices = @transform_0, window_bounds = array<i64: 1>}, {transform_indices = @transform_1, window_bounds = array<i64: 16, 128>}, {transform_indices = @transform_2, window_bounds = array<i64: 16, 128>}]} {
    %c0 = arith.constant 0 : index
    %c0_0 = arith.constant 0 : index
    %0 = vector.load %arg2[%c0, %c0_0] : memref<16x128xf32, #tpu.memory_space<vmem>>, vector<16x128xf32>
    %c0_1 = arith.constant 0 : index
    %1 = memref.load %arg1[%c0_1] : memref<1xf32, #tpu.memory_space<smem>>
    %2 = vector.broadcast %1 : f32 to vector<16x128xf32>
    %3 = arith.mulf %0, %2 : vector<16x128xf32>
    %c0_2 = arith.constant 0 : index
    %c0_3 = arith.constant 0 : index
    %4 = vector.load %arg3[%c0_2, %c0_3] : memref<16x128xf32, #tpu.memory_space<vmem>>, vector<16x128xf32>
    tpu.vector_store %arg3[%c0_2, %c0_3], %3 {strides = array<i32>} : memref<16x128xf32, #tpu.memory_space<vmem>>, vector<16x128xf32>,
    return
  }
  func.func @transform_0(%arg0: i32) -> i32 {
    %c0_i32 = arith.constant 0 : i32
    %c0_i32_0 = arith.constant 0 : i32
    return %c0_i32 : i32
  }
  func.func @transform_1(%arg0: i32) -> (i32, i32) {
    %c0_i32 = arith.constant 0 : i32
    %c0_i32_0 = arith.constant 0 : i32
    return %arg0, %c0_i32 : i32, i32
  }
  func.func @transform_2(%arg0: i32) -> (i32, i32) {
    %c0_i32 = arith.constant 0 : i32
    %c0_i32_0 = arith.constant 0 : i32
    return %arg0, %c0_i32 : i32, i32
  }
}

</mosaic_0001>

<llo_original>
// kernel: tpu_custom_call.1
$region0: #{tpu_custom_call.1}
  #allocation0 [shape = 'u32[]', space=smem, size = 0x4, offset = 0x4, fixed_abs, tag = 'smem constant byte address 0x4 - core index']
  #allocation1 [shape = 'u32[144,128]{1,0:T(1,128)}', space=vmem, size = 0x12000, scoped, tag = 'internal scratch']
  #allocation2 [shape = 'f32[1]{0:T(128)S(6)}', space=smem, size = 0x200, scoped, tag = 'scoped memory for tpu_custom_call.1']
  %s0 = inlined_call_operand.<no memory space> [shape: f32[1], index: 0, kind: input, shape index: {}]
  %s1 = inlined_call_operand.hbm [shape: f32[16,128], index: 1, kind: input, shape index: {}]
  %s2 = inlined_call_operand.hbm [shape: f32[16,128], index: 2, kind: output, shape index: {}]
  %s3 = sld [smem:[#allocation0]]
  $region22: #{tpu_custom_call.1} parent=0
    _
  %s5 = ssub.s32 1, %s3
  %s6 = scalar_select 0, %s5, %s3
  %7 = sst [smem:[#allocation2]] %s0
  $region1: #{tpu_custom_call.1} parent=0
    #allocation3 [shape = 'u8[8192]{0}', space=vmem, size = 0x2000, scoped, tag = 'input window, operand 1, single buffered']
    #allocation4 [shape = 's32[1]{0}', space=sflag, size = 0x4, scoped, tag = 'scoped memory for tpu_custom_call.1']
    #allocation5 [shape = 's32[1]{0}', space=sflag, size = 0x4, scoped, tag = 'scoped memory for tpu_custom_call.1']
    #allocation6 [shape = 'u8[8192]{0}', space=vmem, size = 0x2000, scoped, tag = 'output window, operand 0, single buffered']
    %8 = vsyncpa [#allocation4], 0
    %9 = vsyncpa [#allocation5], 0
    // Predicated region
    $region2: #{tpu_custom_call.1} parent=1 // pred_check
      _
    $region3: #{tpu_custom_call.1} parent=1 // pred_check_branch
      %11 = sbr.rel (0) target = $region5
    $region4: #{tpu_custom_call.1} parent=1 // pred_region
      _
    $region5: #{tpu_custom_call.1} parent=1 // pred_fallthru
      _
    // Predicated region
    $region6: #{tpu_custom_call.1} parent=1 // pred_check
      _
    $region7: #{tpu_custom_call.1} parent=1 // pred_check_branch
      %13 = sbr.rel (0) target = $region9
    $region8: #{tpu_custom_call.1} parent=1 // pred_region
      %s15 = ssub.s32 256, 256
      %16 = vsyncadd [#allocation4], %s15
      %s17 = sshll.u32 [#allocation3], 4
      %s18 = int_to_ptr.vmem [resolvable:$true] %s17
      %23 = dma.hbm_to_vmem [thread:$0]  %s1, 256, %s18, [#allocation4], 128, 128, 8
    $region9: #{tpu_custom_call.1} parent=1 // pred_fallthru
      _
    // Predicated region
    $region10: #{tpu_custom_call.1} parent=1 // pred_check
      _
    $region11: #{tpu_custom_call.1} parent=1 // pred_check_branch
      %25 = sbr.rel (0) target = $region13
    $region12: #{tpu_custom_call.1} parent=1 // pred_region
      %26 = dma.done [#allocation4], 256
    $region13: #{tpu_custom_call.1} parent=1 // pred_fallthru
      _
    %v27 = vld [vmem:[#allocation3] sm:$0xff]
    %v28 = vld [vmem:[#allocation3 + $0x8] sm:$0xff]
    %s29 = sld [smem:[#allocation2]]
    %v30 = vstv %s29
    %v31 = vmul.f32 %v27, %v30
    %v32 = vmul.f32 %v28, %v30
    %33 = vst [vmem:[#allocation6] sm:$0xff] %v31
    %34 = vst [vmem:[#allocation6 + $0x8] sm:$0xff] %v32
    // Predicated region
    $region14: #{tpu_custom_call.1} parent=1 // pred_check
      _
    $region15: #{tpu_custom_call.1} parent=1 // pred_check_branch
      %36 = sbr.rel (0) target = $region17
    $region16: #{tpu_custom_call.1} parent=1 // pred_region
      %s38 = ssub.s32 256, 256
      %39 = vsyncadd [#allocation5], %s38
      %s40 = sshll.u32 [#allocation6], 4
      %s41 = int_to_ptr.vmem [resolvable:$true] %s40
      %46 = dma.vmem_to_hbm [thread:$0]  %s41, 256, %s2, [#allocation5], 128, 128, 8
    $region17: #{tpu_custom_call.1} parent=1 // pred_fallthru
      _
    // Predicated region
    $region18: #{tpu_custom_call.1} parent=1 // pred_check
      _
    $region19: #{tpu_custom_call.1} parent=1 // pred_check_branch
      %48 = sbr.rel (0) target = $region21
    $region20: #{tpu_custom_call.1} parent=1 // pred_region
      %49 = dma.done [#allocation5], 256
    $region21: #{tpu_custom_call.1} parent=1 // pred_fallthru
      _
    %50 = vsyncpa [#allocation4], 1
    %51 = vsyncpa [#allocation5], 1

</llo_original>
